<compile_context>
chip_gen: v7x
topology: tpu7x:2x2x1
jax: 0.10.0
libtpu: 0.0.40
codegen_flags: <defaults>
</compile_context>

<pallas_src>
import jax
import jax.numpy as jnp
from jax.experimental import pallas as pl
from jax.experimental.pallas import tpu as pltpu


# --------------------------------------------------------------------------- #
# Kernel body
# --------------------------------------------------------------------------- #
def _weighted_gate_kernel(gate_ref, z_ref, e_ref, out_ref):
    # gate_ref: (1, 1) scalar in SMEM; sigmoid computed in-kernel (EUP path).
    g = gate_ref[0, 0]
    gate_value = 1.0 / (1.0 + jnp.exp(-g))
    z = z_ref[...]
    e = e_ref[...]
    out_ref[...] = (gate_value * z + (1.0 - gate_value) * e).astype(out_ref.dtype)


# --------------------------------------------------------------------------- #
# Wrapper helpers
# --------------------------------------------------------------------------- #
def _round_up(x, m):
    return ((x + m - 1) // m) * m


def _fused_xla(gate_param, z, e):
    """Small-input / safety fallback: one fused XLA elementwise pass."""
    g = jax.nn.sigmoid(jnp.asarray(gate_param, dtype=jnp.float32))
    return (g * z + (1.0 - g) * e).astype(z.dtype)


def _device_params():
    """Generation-dependent tiling policy (safe to call on any backend)."""
    try:
        kind = jax.devices()[0].device_kind.lower()
    except Exception:  # pragma: no cover - defensive only
        kind = ""
    two_tc = any(t in kind for t in ("v7", "v5p", "v4"))
    if "v7" in kind:
        # v7x: 64 MiB physical VMEM/TC, ~3.2 TB/s HBM -> bigger blocks amortize
        # the ~0.35us fixed per-step overhead; keep VMEM <= 48 MiB for headroom.
        return 4 * 1024 * 1024, 48 * 1024 * 1024, two_tc
    # v5e / v6e: 128 MiB physical VMEM, single TensorCore.
    return 2 * 1024 * 1024, 32 * 1024 * 1024, two_tc


def _choose_layout(total, orig_shape):
    """Pick (rows, lane) such that reshape is a free bitcast and lane is
    lane-dense (multiple of 128) whenever possible.  Never pads."""
    for cand in (2048, 1024, 512, 256, 128):
        if total % cand == 0:
            return total // cand, cand
    # Total not a multiple of 128: use the original trailing dim as the lane.
    # A full-extent last-dim block is exempt from the (8,128) rule; stores may
    # be masked but there is no extra HBM traffic (no pad/slice copies).
    lane = orig_shape[-1] if len(orig_shape) >= 2 else total
    return total // lane, lane


def _choose_tile_rows(rows, max_tile_rows, two_tc):
    """Pick the row-tile: big enough to amortize per-step overhead, small
    enough that the grid has >= ~8 steps so the pipeline overlaps."""
    if rows <= 8:
        return rows  # full-extent block (exempt from the 8-divisibility rule)
    target = max(8, _round_up(pl.cdiv(rows, 8), 8))  # aim for ~8 grid steps
    tile = min(max_tile_rows, target)
    tile = max(8, (tile // 8) * 8)
    if tile >= rows:
        return rows
    if two_tc:
        # Best effort: even number of balanced tiles so the "parallel" grid
        # axis shards evenly across the 2 TensorCores.
        n = pl.cdiv(rows, tile)
        if n > 1 and n % 2 == 1:
            cand = max(8, _round_up(pl.cdiv(rows, n + 1), 8))
            if 8 <= cand < rows and pl.cdiv(rows, cand) % 2 == 0:
                tile = cand
    return tile


# --------------------------------------------------------------------------- #
# Public entry point
# --------------------------------------------------------------------------- #
def weighted_gate(gate_param, z_mc, global_embed, *, min_pallas_bytes=256 * 1024):
    """gate_param: scalar (python float or JAX scalar); z_mc / global_embed:
    same-shape, same-dtype arrays of any rank."""
    assert z_mc.shape == global_embed.shape
    assert z_mc.dtype == global_embed.dtype

    orig_shape = z_mc.shape
    out_dtype = z_mc.dtype
    total = z_mc.size
    elem_bytes = jnp.dtype(out_dtype).itemsize

    # Small-input fallback: a fused 3-op XLA elementwise beats the Pallas
    # dispatch + pipeline prologue/epilogue for tiny tensors.
    if total * elem_bytes < min_pallas_bytes:
        return _fused_xla(gate_param, z_mc, global_embed)

    target_block_bytes, vmem_limit, two_tc = _device_params()

    # Lane-dense layout without any pad / slice copies.
    rows, lane = _choose_layout(total, orig_shape)
    max_tile_rows = max(8, (target_block_bytes // max(1, lane * elem_bytes)) // 8 * 8)
    tile_rows = _choose_tile_rows(rows, max_tile_rows, two_tc)

    # Safety: if a single (full-extent) block would blow the VMEM budget
    # (pathological huge non-128-divisible last dim), use the fused XLA path.
    if 3 * 2 * tile_rows * lane * elem_bytes > int(0.9 * vmem_limit):
        return _fused_xla(gate_param, z_mc, global_embed)

    z2 = jnp.reshape(z_mc, (rows, lane))          # free bitcast (contiguous)
    e2 = jnp.reshape(global_embed, (rows, lane))  # free bitcast (contiguous)
    gate_2d = jnp.reshape(jnp.asarray(gate_param, dtype=jnp.float32), (1, 1))

    num_tiles = pl.cdiv(rows, tile_rows)
    emb_spec = pl.BlockSpec((tile_rows, lane), lambda i: (i, 0))

    out2 = pl.pallas_call(
        _weighted_gate_kernel,
        out_shape=jax.ShapeDtypeStruct((rows, lane), out_dtype),
        grid_spec=pltpu.PrefetchScalarGridSpec(
            num_scalar_prefetch=0,
            grid=(num_tiles,),
            in_specs=[
                pl.BlockSpec(memory_space=pltpu.SMEM),  # scalar gate
                emb_spec,
                emb_spec,
            ],
            out_specs=emb_spec,
        ),
        compiler_params=pltpu.CompilerParams(
            dimension_semantics=("parallel",),
            vmem_limit_bytes=vmem_limit,
        ),
        cost_estimate=pl.CostEstimate(
            flops=3 * total,
            transcendentals=int(num_tiles),
            bytes_accessed=3 * total * elem_bytes,
        ),
    )(gate_2d, z2, e2)

    return jnp.reshape(out2, orig_shape)


# --------------------------------------------------------------------------- #
# Demo / correctness check
# --------------------------------------------------------------------------- #
if __name__ == "__main__":
    key = jax.random.PRNGKey(0)
    k1, k2, k3, k4, k5, k6 = jax.random.split(key, 6)

    # Deterministic parameter init, matching nn.Parameter(torch.tensor(0.8)).
    gate_param = jnp.asarray(0.8, dtype=jnp.float32)
    gate_value = jax.nn.sigmoid(gate_param)

    def reference(z, e):
        return (gate_value * z + (1.0 - gate_value) * e).astype(z.dtype)

    # Case 1: module-sized input (B=2, S=8, H=32), forced through the Pallas
    # kernel (min_pallas_bytes=0) so the kernel itself is exercised on TPU.
    B, S, H = 2, 8, 32
    z_small = jax.random.normal(k1, (B, S, H), dtype=jnp.float32)
    e_small = jax.random.normal(k2, (B, S, H), dtype=jnp.float32)
    out_small = jax.block_until_ready(
        weighted_gate(gate_param, z_small, e_small, min_pallas_bytes=0))
    assert out_small.shape == z_small.shape
    assert jnp.allclose(out_small, reference(z_small, e_small), atol=1e-6, rtol=1e-6)

    # Case 2: larger input exercising the multi-tile, pipelined lane-dense path.
    B2, S2, H2 = 4, 256, 256  # 1 MiB f32 -> lane=2048, ~8 grid steps
    z_big = jax.random.normal(k3, (B2, S2, H2), dtype=jnp.float32)
    e_big = jax.random.normal(k4, (B2, S2, H2), dtype=jnp.float32)
    out_big = jax.block_until_ready(weighted_gate(gate_param, z_big, e_big))
    assert jnp.allclose(out_big, reference(z_big, e_big), atol=1e-6, rtol=1e-6)

    # Case 3: element count not a multiple of 128 -> trailing-dim layout
    # (no pad, masked stores), forced through the Pallas path.
    z_odd = jax.random.normal(k5, (2, 8, 30), dtype=jnp.float32)
    e_odd = jax.random.normal(k6, (2, 8, 30), dtype=jnp.float32)
    out_odd = jax.block_until_ready(
        weighted_gate(gate_param, z_odd, e_odd, min_pallas_bytes=0))
    assert jnp.allclose(out_odd, reference(z_odd, e_odd), atol=1e-6, rtol=1e-6)

    # Case 4: small-input fallback (fused XLA elementwise) for the demo shape.
    out_fb = jax.block_until_ready(weighted_gate(gate_param, z_small, e_small))
    assert jnp.allclose(out_fb, reference(z_small, e_small), atol=1e-6, rtol=1e-6)

    print("KERNEL_OK")
</pallas_src>

<mosaic_0001>
module attributes {stable_mosaic.version = 11 : i64} {
  func.func @_weighted_gate_kernel(%arg0: i32, %arg1: memref<1x1xf32, #tpu.memory_space<smem>>, %arg2: memref<1x512xf32, #tpu.memory_space<vmem>>, %arg3: memref<1x512xf32, #tpu.memory_space<vmem>>, %arg4: memref<1x512xf32, #tpu.memory_space<vmem>>) attributes {dimension_semantics = [#tpu.dimension_semantics<parallel>], iteration_bounds = array<i64: 1>, scalar_prefetch = 0 : i64, scratch_operands = 0 : i64, tpu.core_type = #tpu.core_type<tc>, window_params = [{transform_indices = @transform_0, window_bounds = array<i64: 1, 1>}, {transform_indices = @transform_1, window_bounds = array<i64: 1, 512>}, {transform_indices = @transform_2, window_bounds = array<i64: 1, 512>}, {transform_indices = @transform_3, window_bounds = array<i64: 1, 512>}]} {
    %c0 = arith.constant 0 : index
    %c0_0 = arith.constant 0 : index
    %0 = memref.load %arg1[%c0, %c0_0] : memref<1x1xf32, #tpu.memory_space<smem>>
    %cst = arith.constant 0.000000e+00 : f32
    %1 = arith.subf %cst, %0 : f32
    %2 = math.exp %1 : f32
    %cst_1 = arith.constant 1.000000e+00 : f32
    %3 = arith.addf %cst_1, %2 : f32
    %cst_2 = arith.constant 1.000000e+00 : f32
    %4 = arith.divf %cst_2, %3 : f32
    %c0_3 = arith.constant 0 : index
    %c0_4 = arith.constant 0 : index
    %5 = vector.load %arg2[%c0_3, %c0_4] : memref<1x512xf32, #tpu.memory_space<vmem>>, vector<1x512xf32>
    %c0_5 = arith.constant 0 : index
    %c0_6 = arith.constant 0 : index
    %6 = vector.load %arg3[%c0_5, %c0_6] : memref<1x512xf32, #tpu.memory_space<vmem>>, vector<1x512xf32>
    %7 = vector.broadcast %4 : f32 to vector<1x512xf32>
    %8 = arith.mulf %7, %5 : vector<1x512xf32>
    %cst_7 = arith.constant 1.000000e+00 : f32
    %9 = arith.subf %cst_7, %4 : f32
    %10 = vector.broadcast %9 : f32 to vector<1x512xf32>
    %11 = arith.mulf %10, %6 : vector<1x512xf32>
    %12 = arith.addf %8, %11 : vector<1x512xf32>
    %c0_8 = arith.constant 0 : index
    %c0_9 = arith.constant 0 : index
    %13 = vector.load %arg4[%c0_8, %c0_9] : memref<1x512xf32, #tpu.memory_space<vmem>>, vector<1x512xf32>
    tpu.vector_store %arg4[%c0_8, %c0_9], %12 {strides = array<i32>} : memref<1x512xf32, #tpu.memory_space<vmem>>, vector<1x512xf32>,
    return
  }
  func.func @transform_0(%arg0: i32) -> (i32, i32) {
    %c0_i32 = arith.constant 0 : i32
    %c0_i32_0 = arith.constant 0 : i32
    %c0_i32_1 = arith.constant 0 : i32
    return %c0_i32, %c0_i32_0 : i32, i32
  }
  func.func @transform_1(%arg0: i32) -> (i32, i32) {
    %c0_i32 = arith.constant 0 : i32
    %c0_i32_0 = arith.constant 0 : i32
    return %arg0, %c0_i32 : i32, i32
  }
  func.func @transform_2(%arg0: i32) -> (i32, i32) {
    %c0_i32 = arith.constant 0 : i32
    %c0_i32_0 = arith.constant 0 : i32
    return %arg0, %c0_i32 : i32, i32
  }
  func.func @transform_3(%arg0: i32) -> (i32, i32) {
    %c0_i32 = arith.constant 0 : i32
    %c0_i32_0 = arith.constant 0 : i32
    return %arg0, %c0_i32 : i32, i32
  }
}

</mosaic_0001>

<llo_original>
// kernel: tpu_custom_call.1
$region0: #{tpu_custom_call.1}
  #allocation0 [shape = 'u32[]', space=smem, size = 0x4, offset = 0x4, fixed_abs, tag = 'smem constant byte address 0x4 - core index']
  #allocation1 [shape = 'u32[144,128]{1,0:T(1,128)}', space=vmem, size = 0x12000, scoped, tag = 'internal scratch']
  #allocation2 [shape = 'f32[1,1]{1,0:T(1,128)S(6)}', space=smem, size = 0x200, scoped, tag = 'scoped memory for tpu_custom_call.1']
  %s0 = inlined_call_operand.<no memory space> [shape: f32[1,1], index: 0, kind: input, shape index: {}]
  %s1 = inlined_call_operand.hbm [shape: f32[1,512], index: 1, kind: input, shape index: {}]
  %s2 = inlined_call_operand.vmem [shape: f32[1,512], index: 2, kind: input, shape index: {}]
  %s3 = inlined_call_operand.hbm [shape: f32[1,512], index: 3, kind: output, shape index: {}]
  %s4 = sld [smem:[#allocation0]]
  $region26: #{tpu_custom_call.1} parent=0
    _
  %s6 = ssub.s32 1, %s4
  %s7 = scalar_select 0, %s6, %s4
  %8 = sst [smem:[#allocation2]] %s0
  $region1: #{tpu_custom_call.1} parent=0
    #allocation3 [shape = 'u8[2048]{0}', space=vmem, size = 0x800, scoped, tag = 'input window, operand 1, single buffered']
    #allocation4 [shape = 's32[1]{0}', space=sflag, size = 0x4, scoped, tag = 'scoped memory for tpu_custom_call.1']
    #allocation5 [shape = 's32[1]{0}', space=sflag, size = 0x4, scoped, tag = 'scoped memory for tpu_custom_call.1']
    #allocation6 [shape = 'u8[2048]{0}', space=vmem, size = 0x800, scoped, tag = 'output window, operand 0, single buffered']
    %9 = vsyncpa [#allocation4], 0
    %10 = vsyncpa [#allocation5], 0
    // Predicated region
    $region2: #{tpu_custom_call.1} parent=1 // pred_check
      _
    $region3: #{tpu_custom_call.1} parent=1 // pred_check_branch
      %12 = sbr.rel (0) target = $region5
    $region4: #{tpu_custom_call.1} parent=1 // pred_region
      _
    $region5: #{tpu_custom_call.1} parent=1 // pred_fallthru
      _
    // Predicated region
    $region6: #{tpu_custom_call.1} parent=1 // pred_check
      _
    $region7: #{tpu_custom_call.1} parent=1 // pred_check_branch
      %14 = sbr.rel (0) target = $region9
    $region8: #{tpu_custom_call.1} parent=1 // pred_region
      %s16 = ssub.s32 64, 64
      %17 = vsyncadd [#allocation4], %s16
      %s19 = sshll.u32 [#allocation3], 4
      %s20 = int_to_ptr.vmem [resolvable:$true] %s19
      %22 = dma.hbm_to_vmem [thread:$0]  %s1, 64, %s20, [#allocation4]
    $region9: #{tpu_custom_call.1} parent=1 // pred_fallthru
      _
    // Predicated region
    $region10: #{tpu_custom_call.1} parent=1 // pred_check
      _
    $region11: #{tpu_custom_call.1} parent=1 // pred_check_branch
      %24 = sbr.rel (0) target = $region13
    $region12: #{tpu_custom_call.1} parent=1 // pred_region
      _
    $region13: #{tpu_custom_call.1} parent=1 // pred_fallthru
      _
    // Predicated region
    $region14: #{tpu_custom_call.1} parent=1 // pred_check
      _
    $region15: #{tpu_custom_call.1} parent=1 // pred_check_branch
      %26 = sbr.rel (0) target = $region17
    $region16: #{tpu_custom_call.1} parent=1 // pred_region
      %27 = dma.done [#allocation4], 64
    $region17: #{tpu_custom_call.1} parent=1 // pred_fallthru
      _
    %s28 = sld [smem:[#allocation2]]
    %s29 = ssub.f32 0.0, %s28
    %v30 = vstv %s29
    %v31 = vmul.f32 %v30, 1.442695
    %v32 = vpow.pop %v31
    %s33 = vtos %v32
    %s34 = sadd.f32 %s33, 1.0
    %v35 = vstv %s34
    %v36 = vrcp.pop %v35
    %s37 = vtos %v36
    %v38 = vld [vmem:[#allocation3] sm:$0xf]
    %v39 = vld [vmem:[%s2] sm:$0xf]
    %v40 = vstv %s37
    %v41 = vmul.f32 %v40, %v38
    %s42 = ssub.f32 1.0, %s37
    %v43 = vstv %s42
    %v44 = vmul.f32 %v43, %v39
    %v45 = vadd.f32 %v41, %v44
    %v46 = vlaneseq
    %vm47 = vcmp.ge.s32.totalorder %v46, 0
    %vm48 = vcmp.lt.s32.totalorder %v46, 512
    %vm49 = vmand %vm47, %vm48
    %50 = vst.msk [vmem:[#allocation6] sm:$0xf] %vm49, %v45
    // Predicated region
    $region18: #{tpu_custom_call.1} parent=1 // pred_check
      _
    $region19: #{tpu_custom_call.1} parent=1 // pred_check_branch
      %52 = sbr.rel (0) target = $region21
    $region20: #{tpu_custom_call.1} parent=1 // pred_region
      %s54 = ssub.s32 64, 64
      %55 = vsyncadd [#allocation5], %s54
      %s57 = sshll.u32 [#allocation6], 4
      %s58 = int_to_ptr.vmem [resolvable:$true] %s57
      %60 = dma.vmem_to_hbm [thread:$0]  %s58, 64, %s3, [#allocation5]
    $region21: #{tpu_custom_call.1} parent=1 // pred_fallthru
      _
    // Predicated region
    $region22: #{tpu_custom_call.1} parent=1 // pred_check
      _
    $region23: #{tpu_custom_call.1} parent=1 // pred_check_branch
      %62 = sbr.rel (0) target = $region25
    $region24: #{tpu_custom_call.1} parent=1 // pred_region
      %63 = dma.done [#allocation5], 64
    $region25: #{tpu_custom_call.1} parent=1 // pred_fallthru
      _
    %64 = vsyncpa [#allocation4], 1
    %65 = vsyncpa [#allocation5], 1

</llo_original>
